<compile_context>
chip_gen: v7x
topology: tpu7x:2x2x1
jax: 0.10.0
libtpu: 0.0.40
codegen_flags: <defaults>
</compile_context>

<pallas_src>
import functools
import math

import jax
import jax.numpy as jnp
from jax.experimental import pallas as pl
from jax.experimental.pallas import tpu as pltpu


def _pick_tile(dim, gran, max_tile):
    """Largest multiple of `gran` that divides `dim` and is <= max_tile.
    Small or ragged dims fall back to a single full-extent block (always legal)."""
    if dim <= max_tile:
        return dim
    if dim % gran != 0:
        # TODO(synk): ragged dims use one full-extent block along that axis.
        return dim
    t = (max_tile // gran) * gran
    while t >= gran:
        if dim % t == 0:
            return t
        t -= gran
    return dim


def _nfloss_kernel(z_ref, ld_ref, out_ref, acc_ref, *,
                   prior_loc, neg_half_inv_var, neg_log_norm,
                   z_clamp, log_det_clamp, nan_to_num,
                   d_total, lane_width, n_lane_groups, tb, sub):
    """grid = (n_b [parallel], n_d [arbitrary reduction]).
    acc_ref: (tb, lane_width) f32 VMEM per-lane partial-sum accumulator."""
    j = pl.program_id(1)

    # ---- per-B-tile init: zero accumulator, fold in the log_det broadcast --
    @pl.when(j == 0)
    def _init():
        if log_det_clamp is None:
            ld = ld_ref[...].astype(jnp.float32)          # (tb, 1)
            if nan_to_num:
                ld = jnp.nan_to_num(ld, nan=0.0, posinf=0.0, neginf=0.0)
            # log_det broadcasts over D features; scale by D/lane_width so the
            # final sum over lane_width lanes contributes exactly D * ld.
            acc_ref[...] = jnp.broadcast_to(
                ld * (d_total / float(lane_width)), acc_ref.shape)
        else:
            acc_ref[...] = jnp.zeros(acc_ref.shape, jnp.float32)

    # ---- hot loop: pure elementwise (VPU) work on the (tb, td) z tile ------
    z = z_ref[...].astype(jnp.float32)
    if z_clamp is not None:
        z = jnp.clip(z, -z_clamp, z_clamp)
    if log_det_clamp is not None:
        # Faithful to the reference module: log_det is overwritten by clip(z, ...).
        ld_e = jnp.clip(z, -log_det_clamp, log_det_clamp)
    if nan_to_num:
        z = jnp.nan_to_num(z, nan=0.0, posinf=0.0, neginf=0.0)
        if log_det_clamp is not None:
            ld_e = jnp.nan_to_num(ld_e, nan=0.0, posinf=0.0, neginf=0.0)

    diff = z - prior_loc
    val = diff * diff * neg_half_inv_var + neg_log_norm    # Normal log-prob
    if log_det_clamp is not None:
        val = val + ld_e

    # Fold lane groups with static, vreg-aligned slices (unrolled, no reshape).
    part = val[:, 0:lane_width]
    for g in range(1, n_lane_groups):
        part = part + val[:, g * lane_width:(g + 1) * lane_width]
    acc_ref[...] += part

    # ---- finalize once per B-tile: sublane fold + lane-dense store ---------
    @pl.when(j == pl.num_programs(1) - 1)
    def _fin():
        acc = acc_ref[...]
        red = acc[0:sub, :]
        for s in range(1, tb // sub):
            red = red + acc[s * sub:(s + 1) * sub, :]
        out_ref[...] = red.reshape((1, sub, lane_width))


def nf_loss(z, log_det, *,
            prior_loc=0.0, prior_scale=1.0,
            z_clamp=None, log_det_clamp=None, nan_to_num=False,
            tb_max=1024, td_max=2048,
            z_block_budget_bytes=12 * 1024 * 1024):
    """Pallas NFLoss forward.  z: (B, D), log_det: (B, 1) or (B,).  Returns scalar f32."""
    B, D = z.shape
    log_det = log_det.reshape(B, 1)

    itemsize = jnp.dtype(z.dtype).itemsize
    sub_gran = {4: 8, 2: 16, 1: 32}.get(itemsize, 8)

    # Feature tile first (lane axis, multiples of 128), then size the batch
    # tile so the double-buffered z block respects the VMEM budget.
    td = _pick_tile(D, 128, td_max)
    max_block_elems = max(sub_gran, z_block_budget_bytes // (2 * itemsize))
    tb_cap = max(sub_gran,
                 min(tb_max, (max_block_elems // max(td, 1)) // sub_gran * sub_gran))
    tb = _pick_tile(B, sub_gran, tb_cap)

    n_b, n_d = B // tb, D // td
    lane_width = 128 if td % 128 == 0 else td
    n_lane_groups = td // lane_width
    sub = 8 if tb % 8 == 0 else tb

    kernel = functools.partial(
        _nfloss_kernel,
        prior_loc=float(prior_loc),
        neg_half_inv_var=-0.5 / (float(prior_scale) ** 2),
        neg_log_norm=-(math.log(float(prior_scale)) + 0.5 * math.log(2.0 * math.pi)),
        z_clamp=None if z_clamp is None else float(z_clamp),
        log_det_clamp=None if log_det_clamp is None else float(log_det_clamp),
        nan_to_num=bool(nan_to_num),
        d_total=float(D),
        lane_width=lane_width,
        n_lane_groups=n_lane_groups,
        tb=tb,
        sub=sub,
    )

    partials = pl.pallas_call(
        kernel,
        out_shape=jax.ShapeDtypeStruct((n_b, sub, lane_width), jnp.float32),
        grid_spec=pltpu.PrefetchScalarGridSpec(
            num_scalar_prefetch=0,
            grid=(n_b, n_d),
            in_specs=[
                pl.BlockSpec((tb, td), lambda i, j: (i, j)),   # z tile
                pl.BlockSpec((tb, 1), lambda i, j: (i, 0)),    # log_det (per B-tile)
            ],
            out_specs=pl.BlockSpec((1, sub, lane_width), lambda i, j: (i, 0, 0)),
            scratch_shapes=[pltpu.VMEM((tb, lane_width), jnp.float32)],
        ),
        compiler_params=pltpu.CompilerParams(
            dimension_semantics=("parallel", "arbitrary"),
            vmem_limit_bytes=32 * 1024 * 1024,
        ),
    )(z, log_det)

    # Tiny final combine: sum of per-(B-tile, lane) partials, negate, mean.
    return -jnp.sum(partials, dtype=jnp.float32) / float(B * D)


def nf_loss_ref(z, log_det, *, prior_loc=0.0, prior_scale=1.0,
                z_clamp=None, log_det_clamp=None, nan_to_num=False):
    """Pure-JAX reference mirroring the PyTorch module."""
    z = z.astype(jnp.float32)
    log_det = log_det.reshape(z.shape[0], 1).astype(jnp.float32)
    if z_clamp is not None:
        z = jnp.clip(z, -z_clamp, z_clamp)
    if log_det_clamp is not None:
        log_det = jnp.clip(z, -log_det_clamp, log_det_clamp)  # same as reference
    if nan_to_num:
        z = jnp.nan_to_num(z, nan=0.0, posinf=0.0, neginf=0.0)
        log_det = jnp.nan_to_num(log_det, nan=0.0, posinf=0.0, neginf=0.0)
    log_prob = (-0.5 * ((z - prior_loc) / prior_scale) ** 2
                - jnp.log(prior_scale) - 0.5 * jnp.log(2.0 * jnp.pi))
    return -(log_prob + log_det).mean()


if __name__ == "__main__":
    key = jax.random.PRNGKey(0)
    kz, kd = jax.random.split(key)

    # 1) Small demo shape (single block, grid (1,1)), standard Normal prior.
    B, D = 8, 256
    z = jax.random.normal(kz, (B, D), dtype=jnp.float32) * 2.0
    log_det = jax.random.normal(kd, (B, 1), dtype=jnp.float32)
    loss = jax.block_until_ready(
        nf_loss(z, log_det, z_clamp=5.0, nan_to_num=True))
    ref = nf_loss_ref(z, log_det, z_clamp=5.0, nan_to_num=True)
    assert jnp.allclose(loss, ref, rtol=1e-5, atol=1e-5), (loss, ref)

    # 2) Multi-tile path (tiny tiles to force a (4, 4) grid).
    B2, D2 = 32, 512
    z2 = jax.random.normal(kz, (B2, D2), dtype=jnp.float32)
    ld2 = jax.random.normal(kd, (B2, 1), dtype=jnp.float32)
    loss2 = jax.block_until_ready(nf_loss(z2, ld2, tb_max=8, td_max=128))
    ref2 = nf_loss_ref(z2, ld2)
    assert jnp.allclose(loss2, ref2, rtol=1e-5, atol=1e-5), (loss2, ref2)

    # 3) log_det_clamp branch (reference overwrites log_det with clip(z, ...)).
    B3, D3 = 16, 256
    z3 = jax.random.normal(kz, (B3, D3), dtype=jnp.float32) * 3.0
    ld3 = jax.random.normal(kd, (B3, 1), dtype=jnp.float32)
    loss3 = jax.block_until_ready(
        nf_loss(z3, ld3, z_clamp=4.0, log_det_clamp=3.0, nan_to_num=True))
    ref3 = nf_loss_ref(z3, ld3, z_clamp=4.0, log_det_clamp=3.0, nan_to_num=True)
    assert jnp.allclose(loss3, ref3, rtol=1e-5, atol=1e-5), (loss3, ref3)

    print("KERNEL_OK")
</pallas_src>

<mosaic_0001>
module attributes {stable_mosaic.version = 11 : i64} {
  func.func @_nfloss_kernel(%arg0: i32, %arg1: i32, %arg2: memref<8x256xf32, #tpu.memory_space<vmem>>, %arg3: memref<8x1xf32, #tpu.memory_space<vmem>>, %arg4: memref<1x8x128xf32, #tpu.memory_space<vmem>>, %arg5: memref<8x128xf32, #tpu.memory_space<vmem>>) attributes {dimension_semantics = [#tpu.dimension_semantics<parallel>, #tpu.dimension_semantics<arbitrary>], iteration_bounds = array<i64: 1, 1>, scalar_prefetch = 0 : i64, scratch_operands = 1 : i64, tpu.core_type = #tpu.core_type<tc>, window_params = [{transform_indices = @transform_0, window_bounds = array<i64: 8, 256>}, {transform_indices = @transform_1, window_bounds = array<i64: 8, 1>}, {transform_indices = @transform_2, window_bounds = array<i64: 1, 8, 128>}]} {
    %c0_i32 = arith.constant 0 : i32
    %0 = arith.cmpi eq, %arg1, %c0_i32 : i32
    %1 = arith.extui %0 : i1 to i32
    %c0_i32_0 = arith.constant 0 : i32
    %2 = arith.cmpi ne, %1, %c0_i32_0 : i32
    scf.if %2 {
      %c0_17 = arith.constant 0 : index
      %c0_18 = arith.constant 0 : index
      %35 = vector.load %arg3[%c0_17, %c0_18] : memref<8x1xf32, #tpu.memory_space<vmem>>, vector<8x1xf32>
      %cst_19 = arith.constant 0.000000e+00 : f32
      %cst_20 = arith.constant 0.000000e+00 : f32
      %cst_21 = arith.constant 0.000000e+00 : f32
      %36 = arith.cmpf one, %35, %35 : vector<8x1xf32>
      %37 = vector.broadcast %cst_19 : f32 to vector<8x1xf32>
      %38 = arith.select %36, %37, %35 : vector<8x1xi1>, vector<8x1xf32>
      %cst_22 = arith.constant 0x7F800000 : f32
      %39 = vector.broadcast %cst_22 : f32 to vector<8x1xf32>
      %40 = arith.cmpf oeq, %38, %39 : vector<8x1xf32>
      %41 = vector.broadcast %cst_21 : f32 to vector<8x1xf32>
      %42 = arith.select %40, %41, %38 : vector<8x1xi1>, vector<8x1xf32>
      %cst_23 = arith.constant 0xFF800000 : f32
      %43 = vector.broadcast %cst_23 : f32 to vector<8x1xf32>
      %44 = arith.cmpf oeq, %42, %43 : vector<8x1xf32>
      %45 = vector.broadcast %cst_20 : f32 to vector<8x1xf32>
      %46 = arith.select %44, %45, %42 : vector<8x1xi1>, vector<8x1xf32>
      %cst_24 = arith.constant 2.000000e+00 : f32
      %47 = vector.broadcast %cst_24 : f32 to vector<8x1xf32>
      %48 = arith.mulf %46, %47 : vector<8x1xf32>
      %49 = vector.shape_cast %48 : vector<8x1xf32> to vector<8x1xf32>
      %50 = vector.broadcast %49 : vector<8x1xf32> to vector<8x128xf32>
      %c0_25 = arith.constant 0 : index
      %c0_26 = arith.constant 0 : index
      %51 = vector.load %arg5[%c0_25, %c0_26] : memref<8x128xf32, #tpu.memory_space<vmem>>, vector<8x128xf32>
      tpu.vector_store %arg5[%c0_25, %c0_26], %50 {strides = array<i32>} : memref<8x128xf32, #tpu.memory_space<vmem>>, vector<8x128xf32>,
    } else {
    }
    %c0 = arith.constant 0 : index
    %c0_1 = arith.constant 0 : index
    %3 = vector.load %arg2[%c0, %c0_1] : memref<8x256xf32, #tpu.memory_space<vmem>>, vector<8x256xf32>
    %cst = arith.constant -5.000000e+00 : f32
    %cst_2 = arith.constant 5.000000e+00 : f32
    %4 = vector.broadcast %cst : f32 to vector<8x256xf32>
    %5 = arith.maximumf %4, %3 : vector<8x256xf32>
    %6 = vector.broadcast %cst_2 : f32 to vector<8x256xf32>
    %7 = arith.minimumf %6, %5 : vector<8x256xf32>
    %cst_3 = arith.constant 0.000000e+00 : f32
    %cst_4 = arith.constant 0.000000e+00 : f32
    %cst_5 = arith.constant 0.000000e+00 : f32
    %8 = arith.cmpf one, %7, %7 : vector<8x256xf32>
    %9 = vector.broadcast %cst_3 : f32 to vector<8x256xf32>
    %10 = arith.select %8, %9, %7 : vector<8x256xi1>, vector<8x256xf32>
    %cst_6 = arith.constant 0x7F800000 : f32
    %11 = vector.broadcast %cst_6 : f32 to vector<8x256xf32>
    %12 = arith.cmpf oeq, %10, %11 : vector<8x256xf32>
    %13 = vector.broadcast %cst_5 : f32 to vector<8x256xf32>
    %14 = arith.select %12, %13, %10 : vector<8x256xi1>, vector<8x256xf32>
    %cst_7 = arith.constant 0xFF800000 : f32
    %15 = vector.broadcast %cst_7 : f32 to vector<8x256xf32>
    %16 = arith.cmpf oeq, %14, %15 : vector<8x256xf32>
    %17 = vector.broadcast %cst_4 : f32 to vector<8x256xf32>
    %18 = arith.select %16, %17, %14 : vector<8x256xi1>, vector<8x256xf32>
    %cst_8 = arith.constant 0.000000e+00 : f32
    %19 = vector.broadcast %cst_8 : f32 to vector<8x256xf32>
    %20 = arith.subf %18, %19 : vector<8x256xf32>
    %21 = arith.mulf %20, %20 : vector<8x256xf32>
    %cst_9 = arith.constant -5.000000e-01 : f32
    %22 = vector.broadcast %cst_9 : f32 to vector<8x256xf32>
    %23 = arith.mulf %21, %22 : vector<8x256xf32>
    %cst_10 = arith.constant -0.918938517 : f32
    %24 = vector.broadcast %cst_10 : f32 to vector<8x256xf32>
    %25 = arith.addf %23, %24 : vector<8x256xf32>
    %26 = vector.extract_strided_slice %25 {offsets = [0, 0], sizes = [8, 128], strides = [1, 1]} : vector<8x256xf32> to vector<8x128xf32>
    %27 = vector.extract_strided_slice %25 {offsets = [0, 128], sizes = [8, 128], strides = [1, 1]} : vector<8x256xf32> to vector<8x128xf32>
    %28 = arith.addf %26, %27 : vector<8x128xf32>
    %c0_11 = arith.constant 0 : index
    %c0_12 = arith.constant 0 : index
    %29 = vector.load %arg5[%c0_11, %c0_12] : memref<8x128xf32, #tpu.memory_space<vmem>>, vector<8x128xf32>
    %30 = arith.addf %29, %28 : vector<8x128xf32>
    %c0_13 = arith.constant 0 : index
    %c0_14 = arith.constant 0 : index
    %31 = vector.load %arg5[%c0_13, %c0_14] : memref<8x128xf32, #tpu.memory_space<vmem>>, vector<8x128xf32>
    tpu.vector_store %arg5[%c0_13, %c0_14], %30 {strides = array<i32>} : memref<8x128xf32, #tpu.memory_space<vmem>>, vector<8x128xf32>,
    %c0_i32_15 = arith.constant 0 : i32
    %32 = arith.cmpi eq, %arg1, %c0_i32_15 : i32
    %33 = arith.extui %32 : i1 to i32
    %c0_i32_16 = arith.constant 0 : i32
    %34 = arith.cmpi ne, %33, %c0_i32_16 : i32
    scf.if %34 {
      %c0_17 = arith.constant 0 : index
      %c0_18 = arith.constant 0 : index
      %35 = vector.load %arg5[%c0_17, %c0_18] : memref<8x128xf32, #tpu.memory_space<vmem>>, vector<8x128xf32>
      %36 = vector.shape_cast %35 : vector<8x128xf32> to vector<1x8x128xf32>
      %c0_19 = arith.constant 0 : index
      %c0_20 = arith.constant 0 : index
      %c0_21 = arith.constant 0 : index
      %37 = vector.load %arg4[%c0_19, %c0_20, %c0_21] : memref<1x8x128xf32, #tpu.memory_space<vmem>>, vector<1x8x128xf32>
      tpu.vector_store %arg4[%c0_19, %c0_20, %c0_21], %36 {strides = array<i32>} : memref<1x8x128xf32, #tpu.memory_space<vmem>>, vector<1x8x128xf32>,
    } else {
    }
    return
  }
  func.func @transform_0(%arg0: i32, %arg1: i32) -> (i32, i32) {
    %c0_i32 = arith.constant 0 : i32
    return %arg0, %arg1 : i32, i32
  }
  func.func @transform_1(%arg0: i32, %arg1: i32) -> (i32, i32) {
    %c0_i32 = arith.constant 0 : i32
    %c0_i32_0 = arith.constant 0 : i32
    return %arg0, %c0_i32 : i32, i32
  }
  func.func @transform_2(%arg0: i32, %arg1: i32) -> (i32, i32, i32) {
    %c0_i32 = arith.constant 0 : i32
    %c0_i32_0 = arith.constant 0 : i32
    %c0_i32_1 = arith.constant 0 : i32
    return %arg0, %c0_i32, %c0_i32_0 : i32, i32, i32
  }
}

</mosaic_0001>

<llo_original>
// kernel: tpu_custom_call.1
$region0: #{tpu_custom_call.1}
  #allocation0 [shape = 'u32[]', space=smem, size = 0x4, offset = 0x4, fixed_abs, tag = 'smem constant byte address 0x4 - core index']
  #allocation1 [shape = 'u32[144,128]{1,0:T(1,128)}', space=vmem, size = 0x12000, scoped, tag = 'internal scratch']
  #allocation2 [shape = 'f32[8,128]{1,0:T(8,128)}', space=vmem, size = 0x1000, scoped, tag = 'scratch operand']
  %s0 = inlined_call_operand.hbm [shape: f32[8,256], index: 0, kind: input, shape index: {}]
  %s1 = inlined_call_operand.vmem [shape: f32[8,1], index: 1, kind: input, shape index: {}]
  %s2 = inlined_call_operand.hbm [shape: f32[1,8,128], index: 2, kind: output, shape index: {}]
  %s3 = sld [smem:[#allocation0]]
  $region30: #{tpu_custom_call.1} parent=0
    _
  %s5 = ssub.s32 1, %s3
  %s6 = scalar_select 0, %s5, %s3
  $region1: #{tpu_custom_call.1} parent=0
    #allocation3 [shape = 'u8[8192]{0}', space=vmem, size = 0x2000, scoped, tag = 'input window, operand 0, single buffered']
    #allocation4 [shape = 's32[1]{0}', space=sflag, size = 0x4, scoped, tag = 'scoped memory for tpu_custom_call.1']
    #allocation5 [shape = 's32[1]{0}', space=sflag, size = 0x4, scoped, tag = 'scoped memory for tpu_custom_call.1']
    #allocation6 [shape = 'u8[4096]{0}', space=vmem, size = 0x1000, scoped, tag = 'output window, operand 0, single buffered']
    %7 = vsyncpa [#allocation4], 0
    %8 = vsyncpa [#allocation5], 0
    // Predicated region
    $region2: #{tpu_custom_call.1} parent=1 // pred_check
      _
    $region3: #{tpu_custom_call.1} parent=1 // pred_check_branch
      %10 = sbr.rel (0) target = $region5
    $region4: #{tpu_custom_call.1} parent=1 // pred_region
      %s12 = ssub.s32 256, 256
      %13 = vsyncadd [#allocation4], %s12
      %s15 = sshll.u32 [#allocation3], 4
      %s16 = int_to_ptr.vmem [resolvable:$true] %s15
      %18 = dma.hbm_to_vmem [thread:$0]  %s0, 256, %s16, [#allocation4]
    $region5: #{tpu_custom_call.1} parent=1 // pred_fallthru
      _
    // Predicated region
    $region6: #{tpu_custom_call.1} parent=1 // pred_check
      _
    $region7: #{tpu_custom_call.1} parent=1 // pred_check_branch
      %20 = sbr.rel (0) target = $region9
    $region8: #{tpu_custom_call.1} parent=1 // pred_region
      _
    $region9: #{tpu_custom_call.1} parent=1 // pred_fallthru
      _
    // Predicated region
    $region10: #{tpu_custom_call.1} parent=1 // pred_check
      _
    $region11: #{tpu_custom_call.1} parent=1 // pred_check_branch
      %22 = sbr.rel (0) target = $region13
    $region12: #{tpu_custom_call.1} parent=1 // pred_region
      %23 = dma.done [#allocation4], 256
    $region13: #{tpu_custom_call.1} parent=1 // pred_fallthru
      _
    %p24 = scmp.eq.s32.totalorder 0, 0
    // Predicated region
    $region14: #{tpu_custom_call.1} parent=1 // pred_check
      %p25 = pneg %p24
    $region15: #{tpu_custom_call.1} parent=1 // pred_check_branch
      %27 = sbr.rel (%p25) target = $region17
    $region16: #{tpu_custom_call.1} parent=1 // pred_region
      %v28 = vld [vmem:[%s1] sm:$0xff]
      %vm29 = vcmp.ne.f32.partialorder %v28, %v28
      %v30 = vsel %vm29, 0.0, %v28
      %vm31 = vcmp.eq.f32.partialorder %v30, inf
      %v32 = vsel %vm31, 0.0, %v30
      %vm33 = vcmp.eq.f32.partialorder %v32, -inf
      %v34 = vsel %vm33, 0.0, %v32
      %v35 = vmul.f32 %v34, 2.0
      %37 = vset.pattern.permute.xlu0 0
      %38 = vperm.xlu0 %37, %v35
      %v39 = vpop.permute.xlu0 %38
      %41 = vst [vmem:[#allocation2] sm:$0xff] %v39
    $region17: #{tpu_custom_call.1} parent=1 // pred_fallthru
      _
    %v42 = vld [vmem:[#allocation3] sm:$0xff]
    %v43 = vld [vmem:[#allocation3 + $0x8] sm:$0xff]
    %v44 = vmax.f32 %v42, -5.0
    %v45 = vmax.f32 %v43, -5.0
    %v46 = vmin.f32 %v44, 5.0
    %v47 = vmin.f32 %v45, 5.0
    %vm48 = vcmp.ne.f32.partialorder %v46, %v46
    %vm49 = vcmp.ne.f32.partialorder %v47, %v47
    %v50 = vsel %vm48, 0.0, %v46
    %v51 = vsel %vm49, 0.0, %v47
    %vm52 = vcmp.eq.f32.partialorder %v50, inf
    %vm53 = vcmp.eq.f32.partialorder %v51, inf
    %v54 = vsel %vm52, 0.0, %v50
    %v55 = vsel %vm53, 0.0, %v51
    %vm56 = vcmp.eq.f32.partialorder %v54, -inf
    %vm57 = vcmp.eq.f32.partialorder %v55, -inf
    %v58 = vsel %vm56, 0.0, %v54
    %v59 = vsel %vm57, 0.0, %v55
    %v60 = vmul.f32 %v58, %v58
    %v61 = vmul.f32 %v59, %v59
    %v62 = vmul.f32 %v60, -0.5
    %v63 = vmul.f32 %v61, -0.5
    %v64 = vadd.f32 %v62, -0.9189385
    %v65 = vadd.f32 %v63, -0.9189385
    %v66 = vadd.f32 %v64, %v65
    %v67 = vld [vmem:[#allocation2] sm:$0xff]
    %v68 = vadd.f32 %v67, %v66
    %69 = vst [vmem:[#allocation2] sm:$0xff] %v68
    // Predicated region
    $region18: #{tpu_custom_call.1} parent=1 // pred_check
      %p70 = pneg %p24
    $region19: #{tpu_custom_call.1} parent=1 // pred_check_branch
      %72 = sbr.rel (%p70) target = $region21
    $region20: #{tpu_custom_call.1} parent=1 // pred_region
      %v73 = vld [vmem:[#allocation2] sm:$0xff]
      %74 = vst [vmem:[#allocation6] sm:$0xff] %v73
    $region21: #{tpu_custom_call.1} parent=1 // pred_fallthru
      _
    // Predicated region
    $region22: #{tpu_custom_call.1} parent=1 // pred_check
      _
    $region23: #{tpu_custom_call.1} parent=1 // pred_check_branch
      %76 = sbr.rel (0) target = $region25
    $region24: #{tpu_custom_call.1} parent=1 // pred_region
      %s78 = ssub.s32 128, 128
      %79 = vsyncadd [#allocation5], %s78
      %s81 = sshll.u32 [#allocation6], 4
      %s82 = int_to_ptr.vmem [resolvable:$true] %s81
      %84 = dma.vmem_to_hbm [thread:$0]  %s82, 128, %s2, [#allocation5]
    $region25: #{tpu_custom_call.1} parent=1 // pred_fallthru
      _
    // Predicated region
    $region26: #{tpu_custom_call.1} parent=1 // pred_check
      _
    $region27: #{tpu_custom_call.1} parent=1 // pred_check_branch
      %86 = sbr.rel (0) target = $region29
    $region28: #{tpu_custom_call.1} parent=1 // pred_region
      %87 = dma.done [#allocation5], 128
    $region29: #{tpu_custom_call.1} parent=1 // pred_fallthru
      _
    %88 = vsyncpa [#allocation4], 1
    %89 = vsyncpa [#allocation5], 1

</llo_original>
